<compile_context>
chip_gen: v6e
topology: v6e:2x2x1
jax: 0.10.0
libtpu: 0.0.40
codegen_flags: <defaults>
</compile_context>

<pallas_src>
import functools

import jax
import jax.numpy as jnp
from jax import lax
from jax.experimental import pallas as pl
from jax.experimental.pallas import tpu as pltpu

_VMEM_LIMIT = 24 * 1024 * 1024  # explicit; safe on v7x (64 MiB) and v5e/v6e


def _round_up(a, b):
    return (a + b - 1) // b * b


def _pick_tm(cin, cout, hw, out_itemsize, budget_bytes=12 << 20):
    """Largest M (lane) tile whose double-buffered working set fits the budget."""
    tm = 2048
    while tm > 512:
        per_step = (2 * cin * tm * 4                 # x blocks (f32, dbl-buffered)
                    + 2 * cout * tm * out_itemsize   # the two output splits
                    + 2 * cout * tm * 4)             # in-flight f32 z / y temporaries
        if per_step <= budget_bytes:
            break
        tm //= 2
    return max(128, min(tm, _round_up(hw, 128)))


# ----------------------------------------------------------------------------
# Fast path: whole problem resident in VMEM, single kernel invocation.
# ----------------------------------------------------------------------------
def _fused_kernel(x_ref, w_ref, gamma_ref, beta_ref, o1_ref, o2_ref, *,
                  n_valid, eps, c_hidden):
    """conv1x1 -> batch stats -> folded BN -> SiLU -> channel split, in one pass."""
    n_batch = x_ref.shape[0]
    w = w_ref[...]
    cout = w.shape[0]
    zs = []
    s = jnp.zeros((cout, 1), jnp.float32)
    sq = jnp.zeros((cout, 1), jnp.float32)
    for n in range(n_batch):                       # static unroll over batch
        z = jnp.dot(w, x_ref[n], preferred_element_type=jnp.float32)  # (Cout, HW)
        zs.append(z)
        s = s + jnp.sum(z, axis=1, keepdims=True)
        sq = sq + jnp.sum(z * z, axis=1, keepdims=True)
    inv_n = 1.0 / n_valid
    mean = s * inv_n
    var = jnp.maximum(sq * inv_n - mean * mean, 0.0)
    scale = gamma_ref[...] * lax.rsqrt(var + eps)
    shift = beta_ref[...] - mean * scale
    for n in range(n_batch):
        y = zs[n] * scale + shift
        y = y * jax.nn.sigmoid(y)                  # SiLU in f32 (v5e-safe)
        o1_ref[n] = y[:c_hidden, :].astype(o1_ref.dtype)
        o2_ref[n] = y[c_hidden:, :].astype(o2_ref.dtype)


# ----------------------------------------------------------------------------
# Tiled path, pass 1: per-TensorCore partial sum(z), sum(z^2).
# ----------------------------------------------------------------------------
def _stats_kernel(x_ref, w_ref, sum_ref, sq_ref, *, hw, tm, n_half):
    c = pl.program_id(0)
    n = pl.program_id(1)
    j = pl.program_id(2)

    @pl.when((n == 0) & (j == 0))
    def _():
        sum_ref[...] = jnp.zeros_like(sum_ref)
        sq_ref[...] = jnp.zeros_like(sq_ref)

    # Lane mask: ragged last tile and the clamped overshoot tile of the 2-way
    # core split contribute exactly zero (the conv has no bias, so zeroed
    # pixels do not pollute the moments).
    start = (c * n_half + j) * tm
    lane = lax.broadcasted_iota(jnp.int32, (1, tm), 1)
    x = jnp.where(start + lane < hw, x_ref[0], 0.0)

    z = jnp.dot(w_ref[...], x, preferred_element_type=jnp.float32)  # (Cout, TM)
    sum_ref[...] += jnp.sum(z, axis=1, keepdims=True)
    sq_ref[...] += jnp.sum(z * z, axis=1, keepdims=True)


# ----------------------------------------------------------------------------
# Tiled path, pass 2: conv + folded BN + SiLU + channel split.
# ----------------------------------------------------------------------------
def _apply_kernel(x_ref, w_ref, scale_ref, shift_ref, o1_ref, o2_ref, *,
                  c_hidden):
    z = jnp.dot(w_ref[...], x_ref[0], preferred_element_type=jnp.float32)
    y = z * scale_ref[...] + shift_ref[...]        # BN folded into scale/shift
    y = y * jax.nn.sigmoid(y)                      # SiLU in f32 (v5e-safe)
    o1_ref[0] = y[:c_hidden, :].astype(o1_ref.dtype)
    o2_ref[0] = y[c_hidden:, :].astype(o2_ref.dtype)


def c2f_forward(x_nchw, conv_w, bn_gamma, bn_beta, *, c_hidden, eps=1e-5,
                out_dtype=jnp.bfloat16, tm=None, force_tiled=False):
    """C2f.forward as written in the spec: the two `self.c`-channel splits of
    cv1(x) = SiLU(BatchNorm_train(Conv1x1(x)))."""
    N, Cin, H, W = x_nchw.shape
    Cout = conv_w.shape[0]
    assert Cout == 2 * c_hidden, (Cout, c_hidden)
    HW = H * W
    M = N * HW
    ob = jnp.dtype(out_dtype).itemsize

    x_r = x_nchw.reshape(N, Cin, HW).astype(jnp.float32)  # free reshape, no transpose
    w = conv_w.reshape(Cout, Cin).astype(jnp.float32)
    gamma = bn_gamma.reshape(Cout, 1).astype(jnp.float32)
    beta = bn_beta.reshape(Cout, 1).astype(jnp.float32)

    conv_flops = 2 * M * Cin * Cout

    # --------------------------- small-problem fast path --------------------
    vmem_need = M * (Cin * 4 + Cout * 4 + Cout * ob) + Cout * Cin * 4
    if not force_tiled and vmem_need <= 6 * 1024 * 1024:
        out1, out2 = pl.pallas_call(
            functools.partial(_fused_kernel, n_valid=float(M), eps=eps,
                              c_hidden=c_hidden),
            out_shape=(jax.ShapeDtypeStruct((N, c_hidden, HW), out_dtype),
                       jax.ShapeDtypeStruct((N, c_hidden, HW), out_dtype)),
            grid=(1,),
            in_specs=[
                pl.BlockSpec((N, Cin, HW), lambda i: (0, 0, 0)),
                pl.BlockSpec((Cout, Cin), lambda i: (0, 0)),
                pl.BlockSpec((Cout, 1), lambda i: (0, 0)),
                pl.BlockSpec((Cout, 1), lambda i: (0, 0)),
            ],
            out_specs=(pl.BlockSpec((N, c_hidden, HW), lambda i: (0, 0, 0)),
                       pl.BlockSpec((N, c_hidden, HW), lambda i: (0, 0, 0))),
            compiler_params=pltpu.CompilerParams(
                dimension_semantics=("arbitrary",),
                vmem_limit_bytes=_VMEM_LIMIT),
            cost_estimate=pl.CostEstimate(
                flops=conv_flops + 8 * M * Cout,
                transcendentals=M * Cout,
                bytes_accessed=M * Cin * 4 + M * Cout * ob + Cout * (Cin + 2) * 4),
        )(x_r, w, gamma, beta)
        return [out1.reshape(N, c_hidden, H, W), out2.reshape(N, c_hidden, H, W)]

    # ------------------------------- tiled path ------------------------------
    if tm is None:
        tm = _pick_tm(Cin, Cout, HW, ob)
    n_tiles = pl.cdiv(HW, tm)
    n_half = pl.cdiv(n_tiles, 2)       # 2-way pixel-tile split (both v7x TCs)

    def x_map_stats(c, n, j):
        # Clamp so the DMA stays in bounds when n_tiles is odd; the in-kernel
        # lane mask zeroes the duplicate tile's contribution.
        return (n, 0, jnp.minimum(c * n_half + j, n_tiles - 1))

    # Pass 1: per-core partial moments of z (accumulated in the resident
    # output block across the "arbitrary" axes).
    psum, psq = pl.pallas_call(
        functools.partial(_stats_kernel, hw=HW, tm=tm, n_half=n_half),
        out_shape=(jax.ShapeDtypeStruct((2, Cout, 1), jnp.float32),
                   jax.ShapeDtypeStruct((2, Cout, 1), jnp.float32)),
        grid=(2, N, n_half),
        in_specs=[
            pl.BlockSpec((1, Cin, tm), x_map_stats),
            pl.BlockSpec((Cout, Cin), lambda c, n, j: (0, 0)),
        ],
        out_specs=(pl.BlockSpec((1, Cout, 1), lambda c, n, j: (c, 0, 0)),
                   pl.BlockSpec((1, Cout, 1), lambda c, n, j: (c, 0, 0))),
        compiler_params=pltpu.CompilerParams(
            dimension_semantics=("parallel", "arbitrary", "arbitrary"),
            vmem_limit_bytes=_VMEM_LIMIT),
        cost_estimate=pl.CostEstimate(
            flops=conv_flops + 4 * M * Cout,
            transcendentals=0,
            bytes_accessed=M * Cin * 4 + Cout * Cin * 4 + 4 * Cout * 4),
    )(x_r, w)

    # Tiny finalize in plain XLA: fold training-mode batch stats into
    # scale = gamma*rsqrt(var+eps), shift = beta - mean*scale.
    # (E[z^2]-E[z]^2 in f32; max(.,0) guards tiny negative cancellation.)
    s = jnp.sum(psum, axis=0)                      # (Cout, 1)
    sq = jnp.sum(psq, axis=0)
    mean = s / jnp.float32(M)
    var = jnp.maximum(sq / jnp.float32(M) - mean * mean, 0.0)
    scale = gamma * lax.rsqrt(var + eps)
    shift = beta - mean * scale

    # Pass 2: recompute z per tile, apply folded BN + SiLU, write both splits.
    out1, out2 = pl.pallas_call(
        functools.partial(_apply_kernel, c_hidden=c_hidden),
        out_shape=(jax.ShapeDtypeStruct((N, c_hidden, HW), out_dtype),
                   jax.ShapeDtypeStruct((N, c_hidden, HW), out_dtype)),
        grid=(N, n_tiles),
        in_specs=[
            pl.BlockSpec((1, Cin, tm), lambda n, m: (n, 0, m)),
            pl.BlockSpec((Cout, Cin), lambda n, m: (0, 0)),
            pl.BlockSpec((Cout, 1), lambda n, m: (0, 0)),
            pl.BlockSpec((Cout, 1), lambda n, m: (0, 0)),
        ],
        out_specs=(pl.BlockSpec((1, c_hidden, tm), lambda n, m: (n, 0, m)),
                   pl.BlockSpec((1, c_hidden, tm), lambda n, m: (n, 0, m))),
        compiler_params=pltpu.CompilerParams(
            dimension_semantics=("parallel", "parallel"),
            vmem_limit_bytes=_VMEM_LIMIT),
        cost_estimate=pl.CostEstimate(
            flops=conv_flops + 6 * M * Cout,
            transcendentals=M * Cout,
            bytes_accessed=M * Cin * 4 + M * Cout * ob + Cout * (Cin + 2) * 4),
    )(x_r, w, scale, shift)

    return [out1.reshape(N, c_hidden, H, W), out2.reshape(N, c_hidden, H, W)]


def _reference(x, conv_w, bn_gamma, bn_beta, c_hidden, eps=1e-5):
    """Pure-JAX f32 reference: conv1x1 -> train-mode BN -> SiLU -> split."""
    z = lax.conv_general_dilated(
        x, conv_w, window_strides=(1, 1), padding="VALID",
        dimension_numbers=("NCHW", "OIHW", "NCHW"))
    mean = jnp.mean(z, axis=(0, 2, 3), keepdims=True)
    var = jnp.mean(jnp.square(z - mean), axis=(0, 2, 3), keepdims=True)
    g = bn_gamma.reshape(1, -1, 1, 1)
    b = bn_beta.reshape(1, -1, 1, 1)
    y = g * (z - mean) * lax.rsqrt(var + eps) + b
    y = y * jax.nn.sigmoid(y)
    return [y[:, :c_hidden], y[:, c_hidden:2 * c_hidden]]


if __name__ == "__main__":
    # C2f(8, 16): c1=8, c2=16, e=0.5 -> self.c = 8; cv1 = Conv(8, 16, k=1, s=1).
    c1, c2 = 8, 16
    c_hidden = int(c2 * 0.5)

    key = jax.random.PRNGKey(0)
    k_x, k_w, k_g, k_b, k_x2 = jax.random.split(key, 5)

    x = jax.random.uniform(k_x, (1, c1, 25, 25), dtype=jnp.float32)
    conv_w = 0.1 * jax.random.normal(k_w, (2 * c_hidden, c1, 1, 1), jnp.float32)
    bn_gamma = 1.0 + 0.2 * jax.random.normal(k_g, (2 * c_hidden,), jnp.float32)
    bn_beta = 0.1 * jax.random.normal(k_b, (2 * c_hidden,), jnp.float32)

    # Spec shape (1, 8, 25, 25): takes the fused single-pass VMEM-resident path.
    y = c2f_forward(x, conv_w, bn_gamma, bn_beta, c_hidden=c_hidden)
    y = [jax.block_until_ready(t) for t in y]
    y_ref = _reference(x, conv_w, bn_gamma, bn_beta, c_hidden)
    assert len(y) == 2
    for a, b in zip(y, y_ref):
        assert a.shape == (1, c_hidden, 25, 25)
        assert jnp.allclose(a.astype(jnp.float32), b, rtol=2e-2, atol=1e-2), \
            float(jnp.max(jnp.abs(a.astype(jnp.float32) - b)))

    # Also exercise the general streaming path (2-way core split, ragged tile
    # masking, overshoot-tile clamp, tiled accumulation) on a larger input.
    x2 = jax.random.uniform(k_x2, (2, c1, 33, 33), dtype=jnp.float32)
    y2 = c2f_forward(x2, conv_w, bn_gamma, bn_beta, c_hidden=c_hidden,
                     force_tiled=True, tm=512)
    y2 = [jax.block_until_ready(t) for t in y2]
    y2_ref = _reference(x2, conv_w, bn_gamma, bn_beta, c_hidden)
    for a, b in zip(y2, y2_ref):
        assert a.shape == (2, c_hidden, 33, 33)
        assert jnp.allclose(a.astype(jnp.float32), b, rtol=2e-2, atol=1e-2), \
            float(jnp.max(jnp.abs(a.astype(jnp.float32) - b)))

    # TODO(synk): `vis(...)` in the reference forward is undefined
    # (visualization side effect, no compute semantics) and the training-mode
    # BatchNorm running_mean/running_var buffer updates are not emitted
    # (forward-only activations are returned).
    print("KERNEL_OK")
</pallas_src>

<mosaic_0001>
module attributes {stable_mosaic.version = 11 : i64} {
  func.func @_fused_kernel(%arg0: i32, %arg1: memref<1x8x625xf32, #tpu.memory_space<vmem>>, %arg2: memref<16x8xf32, #tpu.memory_space<vmem>>, %arg3: memref<16x1xf32, #tpu.memory_space<vmem>>, %arg4: memref<16x1xf32, #tpu.memory_space<vmem>>, %arg5: memref<1x8x625xbf16, #tpu.memory_space<vmem>>, %arg6: memref<1x8x625xbf16, #tpu.memory_space<vmem>>) attributes {dimension_semantics = [#tpu.dimension_semantics<arbitrary>], iteration_bounds = array<i64: 1>, scalar_prefetch = 0 : i64, scratch_operands = 0 : i64, tpu.core_type = #tpu.core_type<tc>, window_params = [{pipeline_mode = #tpu.pipeline_mode<synchronous>, transform_indices = @transform_0, window_bounds = array<i64: 1, 8, 625>}, {pipeline_mode = #tpu.pipeline_mode<synchronous>, transform_indices = @transform_1, window_bounds = array<i64: 16, 8>}, {pipeline_mode = #tpu.pipeline_mode<synchronous>, transform_indices = @transform_2, window_bounds = array<i64: 16, 1>}, {pipeline_mode = #tpu.pipeline_mode<synchronous>, transform_indices = @transform_3, window_bounds = array<i64: 16, 1>}, {pipeline_mode = #tpu.pipeline_mode<synchronous>, transform_indices = @transform_4, window_bounds = array<i64: 1, 8, 625>}, {pipeline_mode = #tpu.pipeline_mode<synchronous>, transform_indices = @transform_5, window_bounds = array<i64: 1, 8, 625>}]} {
    %c0 = arith.constant 0 : index
    %c0_0 = arith.constant 0 : index
    %0 = vector.load %arg2[%c0, %c0_0] : memref<16x8xf32, #tpu.memory_space<vmem>>, vector<16x8xf32>
    %cst = arith.constant 0.000000e+00 : f32
    %1 = vector.broadcast %cst : f32 to vector<16x1xf32>
    %cst_1 = arith.constant 0.000000e+00 : f32
    %2 = vector.broadcast %cst_1 : f32 to vector<16x1xf32>
    %c0_2 = arith.constant 0 : index
    %c0_3 = arith.constant 0 : index
    %c0_4 = arith.constant 0 : index
    %3 = vector.load %arg1[%c0_2, %c0_3, %c0_4] : memref<1x8x625xf32, #tpu.memory_space<vmem>>, vector<1x8x625xf32>
    %4 = vector.shape_cast %3 : vector<1x8x625xf32> to vector<8x625xf32>
    %cst_5 = arith.constant dense<0.000000e+00> : vector<16x625xf32>
    %5 = tpu.matmul %0, %4, %cst_5 {dimension_numbers = #tpu.dot_dimension_numbers<[1], [0], [0], [1], [0, 0, 1, 1], [], []>} : vector<16x8xf32>, vector<8x625xf32>, vector<16x625xf32> -> vector<16x625xf32>
    %cst_6 = arith.constant dense<0.000000e+00> : vector<16xf32>
    %6 = vector.multi_reduction <add>, %5, %cst_6 [1] : vector<16x625xf32> to vector<16xf32>
    %7 = vector.shape_cast %6 : vector<16xf32> to vector<16x1xf32>
    %8 = arith.addf %1, %7 : vector<16x1xf32>
    %9 = arith.mulf %5, %5 : vector<16x625xf32>
    %cst_7 = arith.constant dense<0.000000e+00> : vector<16xf32>
    %10 = vector.multi_reduction <add>, %9, %cst_7 [1] : vector<16x625xf32> to vector<16xf32>
    %11 = vector.shape_cast %10 : vector<16xf32> to vector<16x1xf32>
    %12 = arith.addf %2, %11 : vector<16x1xf32>
    %cst_8 = arith.constant 1.600000e-03 : f32
    %13 = vector.broadcast %cst_8 : f32 to vector<16x1xf32>
    %14 = arith.mulf %8, %13 : vector<16x1xf32>
    %cst_9 = arith.constant 1.600000e-03 : f32
    %15 = vector.broadcast %cst_9 : f32 to vector<16x1xf32>
    %16 = arith.mulf %12, %15 : vector<16x1xf32>
    %17 = arith.mulf %14, %14 : vector<16x1xf32>
    %18 = arith.subf %16, %17 : vector<16x1xf32>
    %cst_10 = arith.constant 0.000000e+00 : f32
    %19 = vector.broadcast %cst_10 : f32 to vector<16x1xf32>
    %20 = arith.maximumf %18, %19 : vector<16x1xf32>
    %c0_11 = arith.constant 0 : index
    %c0_12 = arith.constant 0 : index
    %21 = vector.load %arg3[%c0_11, %c0_12] : memref<16x1xf32, #tpu.memory_space<vmem>>, vector<16x1xf32>
    %cst_13 = arith.constant 9.99999974E-6 : f32
    %22 = vector.broadcast %cst_13 : f32 to vector<16x1xf32>
    %23 = arith.addf %20, %22 : vector<16x1xf32>
    %24 = math.rsqrt %23 : vector<16x1xf32>
    %25 = arith.mulf %21, %24 : vector<16x1xf32>
    %c0_14 = arith.constant 0 : index
    %c0_15 = arith.constant 0 : index
    %26 = vector.load %arg4[%c0_14, %c0_15] : memref<16x1xf32, #tpu.memory_space<vmem>>, vector<16x1xf32>
    %27 = arith.mulf %14, %25 : vector<16x1xf32>
    %28 = arith.subf %26, %27 : vector<16x1xf32>
    %29 = vector.broadcast %25 : vector<16x1xf32> to vector<16x625xf32>
    %30 = arith.mulf %5, %29 : vector<16x625xf32>
    %31 = vector.broadcast %28 : vector<16x1xf32> to vector<16x625xf32>
    %32 = arith.addf %30, %31 : vector<16x625xf32>
    %33 = arith.negf %32 : vector<16x625xf32>
    %34 = math.exp %33 : vector<16x625xf32>
    %cst_16 = arith.constant 1.000000e+00 : f32
    %35 = vector.broadcast %cst_16 : f32 to vector<16x625xf32>
    %36 = arith.addf %35, %34 : vector<16x625xf32>
    %37 = arith.divf %35, %36 : vector<16x625xf32>
    %38 = arith.mulf %32, %37 : vector<16x625xf32>
    %39 = vector.extract_strided_slice %38 {offsets = [0, 0], sizes = [8, 625], strides = [1, 1]} : vector<16x625xf32> to vector<8x625xf32>
    %40 = arith.truncf %39 : vector<8x625xf32> to vector<8x625xbf16>
    %c0_17 = arith.constant 0 : index
    %c0_18 = arith.constant 0 : index
    %c0_19 = arith.constant 0 : index
    %41 = vector.load %arg5[%c0_17, %c0_18, %c0_19] : memref<1x8x625xbf16, #tpu.memory_space<vmem>>, vector<1x8x625xbf16>
    %42 = vector.shape_cast %41 : vector<1x8x625xbf16> to vector<8x625xbf16>
    %43 = vector.shape_cast %40 : vector<8x625xbf16> to vector<1x8x625xbf16>
    tpu.vector_store %arg5[%c0_17, %c0_18, %c0_19], %43 {strides = array<i32>} : memref<1x8x625xbf16, #tpu.memory_space<vmem>>, vector<1x8x625xbf16>,
    %44 = vector.extract_strided_slice %38 {offsets = [8, 0], sizes = [8, 625], strides = [1, 1]} : vector<16x625xf32> to vector<8x625xf32>
    %45 = arith.truncf %44 : vector<8x625xf32> to vector<8x625xbf16>
    %c0_20 = arith.constant 0 : index
    %c0_21 = arith.constant 0 : index
    %c0_22 = arith.constant 0 : index
    %46 = vector.load %arg6[%c0_20, %c0_21, %c0_22] : memref<1x8x625xbf16, #tpu.memory_space<vmem>>, vector<1x8x625xbf16>
    %47 = vector.shape_cast %46 : vector<1x8x625xbf16> to vector<8x625xbf16>
    %48 = vector.shape_cast %45 : vector<8x625xbf16> to vector<1x8x625xbf16>
    tpu.vector_store %arg6[%c0_20, %c0_21, %c0_22], %48 {strides = array<i32>} : memref<1x8x625xbf16, #tpu.memory_space<vmem>>, vector<1x8x625xbf16>,
    return
  }
  func.func @transform_0(%arg0: i32) -> (i32, i32, i32) {
    %c0_i32 = arith.constant 0 : i32
    %c0_i32_0 = arith.constant 0 : i32
    %c0_i32_1 = arith.constant 0 : i32
    %c0_i32_2 = arith.constant 0 : i32
    return %c0_i32, %c0_i32_0, %c0_i32_1 : i32, i32, i32
  }
  func.func @transform_1(%arg0: i32) -> (i32, i32) {
    %c0_i32 = arith.constant 0 : i32
    %c0_i32_0 = arith.constant 0 : i32
    %c0_i32_1 = arith.constant 0 : i32
    return %c0_i32, %c0_i32_0 : i32, i32
  }
  func.func @transform_2(%arg0: i32) -> (i32, i32) {
    %c0_i32 = arith.constant 0 : i32
    %c0_i32_0 = arith.constant 0 : i32
    %c0_i32_1 = arith.constant 0 : i32
    return %c0_i32, %c0_i32_0 : i32, i32
  }
  func.func @transform_3(%arg0: i32) -> (i32, i32) {
    %c0_i32 = arith.constant 0 : i32
    %c0_i32_0 = arith.constant 0 : i32
    %c0_i32_1 = arith.constant 0 : i32
    return %c0_i32, %c0_i32_0 : i32, i32
  }
  func.func @transform_4(%arg0: i32) -> (i32, i32, i32) {
    %c0_i32 = arith.constant 0 : i32
    %c0_i32_0 = arith.constant 0 : i32
    %c0_i32_1 = arith.constant 0 : i32
    %c0_i32_2 = arith.constant 0 : i32
    return %c0_i32, %c0_i32_0, %c0_i32_1 : i32, i32, i32
  }
  func.func @transform_5(%arg0: i32) -> (i32, i32, i32) {
    %c0_i32 = arith.constant 0 : i32
    %c0_i32_0 = arith.constant 0 : i32
    %c0_i32_1 = arith.constant 0 : i32
    %c0_i32_2 = arith.constant 0 : i32
    return %c0_i32, %c0_i32_0, %c0_i32_1 : i32, i32, i32
  }
}

</mosaic_0001>

<llo_original>
// kernel: tpu_custom_call.1
$region0: #{tpu_custom_call.1}
  #allocation0 [shape = 'u32[]', space=smem, size = 0x4, offset = 0x4, fixed_abs, tag = 'smem constant byte address 0x4 - core index']
  #allocation1 [shape = 'u32[144,128]{1,0:T(1,128)}', space=vmem, size = 0x12000, scoped, tag = 'internal scratch']
  %s0 = inlined_call_operand.vmem [shape: f32[1,8,625], index: 0, kind: input, shape index: {}]
  %s1 = inlined_call_operand.vmem [shape: f32[16,8], index: 1, kind: input, shape index: {}]
  %s2 = inlined_call_operand.vmem [shape: f32[16,1], index: 2, kind: input, shape index: {}]
  %s3 = inlined_call_operand.vmem [shape: f32[16,1], index: 3, kind: input, shape index: {}]
  %s4 = inlined_call_operand.hbm [shape: bf16[1,8,625], index: 4, kind: output, shape index: {0}]
  %s5 = inlined_call_operand.hbm [shape: bf16[1,8,625], index: 5, kind: output, shape index: {1}]
  %6 = xla_tuple %s4, %s5
  %s7 = sld [smem:[#allocation0]]
  $region34: #{tpu_custom_call.1} parent=0
    _
  %s9 = ssub.s32 1, %s7
  %s10 = scalar_select 0, %s9, %s7
  $region1: #{tpu_custom_call.1} parent=0
    #allocation2 [shape = 'u8[10240]{0}', space=vmem, size = 0x2800, scoped, tag = 'output window, operand 0, single buffered']
    #allocation3 [shape = 's32[1]{0}', space=sflag, size = 0x4, scoped, tag = 'scoped memory for tpu_custom_call.1']
    #allocation4 [shape = 'u8[10240]{0}', space=vmem, size = 0x2800, scoped, tag = 'output window, operand 1, single buffered']
    #allocation5 [shape = 's32[1]{0}', space=sflag, size = 0x4, scoped, tag = 'scoped memory for tpu_custom_call.1']
    %11 = vsyncpa [#allocation3], 0
    %12 = vsyncpa [#allocation5], 0
    // Predicated region
    $region2: #{tpu_custom_call.1} parent=1 // pred_check
      _
    $region3: #{tpu_custom_call.1} parent=1 // pred_check_branch
      %14 = sbr.rel (0) target = $region5
    $region4: #{tpu_custom_call.1} parent=1 // pred_region
      _
    $region5: #{tpu_custom_call.1} parent=1 // pred_fallthru
      _
    // Predicated region
    $region6: #{tpu_custom_call.1} parent=1 // pred_check
      _
    $region7: #{tpu_custom_call.1} parent=1 // pred_check_branch
      %16 = sbr.rel (0) target = $region9
    $region8: #{tpu_custom_call.1} parent=1 // pred_region
      _
    $region9: #{tpu_custom_call.1} parent=1 // pred_fallthru
      _
    // Predicated region
    $region10: #{tpu_custom_call.1} parent=1 // pred_check
      _
    $region11: #{tpu_custom_call.1} parent=1 // pred_check_branch
      %18 = sbr.rel (0) target = $region13
    $region12: #{tpu_custom_call.1} parent=1 // pred_region
      _
    $region13: #{tpu_custom_call.1} parent=1 // pred_fallthru
      _
    // Predicated region
    $region14: #{tpu_custom_call.1} parent=1 // pred_check
      _
    $region15: #{tpu_custom_call.1} parent=1 // pred_check_branch
      %20 = sbr.rel (0) target = $region17
    $region16: #{tpu_custom_call.1} parent=1 // pred_region
      _
    $region17: #{tpu_custom_call.1} parent=1 // pred_fallthru
      _
    %v21 = vld [vmem:[%s1] sm:$0xff]
    %v22 = vld [vmem:[%s1 + $0x8] sm:$0xff]
    %v23 = vld [vmem:[%s0] sm:$0xff]
    %v24 = vld [vmem:[%s0 + $0x8] sm:$0xff]
    %v25 = vld [vmem:[%s0 + $0x10] sm:$0xff]
    %v26 = vld [vmem:[%s0 + $0x18] sm:$0xff]
    %v27 = vld [vmem:[%s0 + $0x20] sm:$0xff]
    %vm28 = vcmask 64512
    %v30 = vsel %vm28, %v21, 0
    %v33 = vsel %vm28, %v22, 0
    %35 = vmatprep.subr.mxu0 0.0
    %36 = vmatpush1.msra.mxu0 0.0
    %37 = vmatprep.subr.mxu0 0.0
    %38 = vmatpush1.msra.mxu0 0.0
    %39 = vmatprep.subr.mxu0 0.0
    %40 = vmatpush1.msra.mxu0 0.0
    %41 = vmatprep.subr.mxu0 0.0
    %42 = vmatpush1.msra.mxu0 0.0
    %43 = vmatprep.subr.mxu0 0.0
    %44 = vmatpush1.msra.mxu0 0.0
    %45 = vmatprep.subr.mxu0 0.0
    %46 = vmatpush1.msra.mxu0 0.0
    %47 = vmatprep.subr.mxu0 0.0
    %48 = vmatpush1.msra.mxu0 0.0
    %49 = vmatprep.subr.mxu0 0.0
    %50 = vmatpush1.msra.mxu0 0.0
    %51 = vmatprep.subr.mxu0 0.0
    %52 = vmatpush1.msra.mxu0 0.0
    %53 = vmatprep.subr.mxu0 0.0
    %54 = vmatpush1.msra.mxu0 0.0
    %55 = vmatprep.subr.mxu0 0.0
    %56 = vmatpush1.msra.mxu0 0.0
    %57 = vmatprep.subr.mxu0 0.0
    %58 = vmatpush1.msra.mxu0 0.0
    %59 = vmatprep.subr.mxu0 0.0
    %60 = vmatpush1.msra.mxu0 0.0
    %61 = vmatprep.subr.mxu0 0.0
    %62 = vmatpush1.msra.mxu0 0.0
    %63 = vmatprep.subr.mxu0 0.0
    %64 = vmatpush1.msra.mxu0 0.0
    %65 = vmatprep.subr.mxu0 %v24
    %66 = vmatpush1.msra.mxu0 %v23
    %67 = vmatprep.subr.mxu0 0.0
    %68 = vmatpush2.msra.mxu0 0.0
    %69 = vmatprep.subr.mxu0 0.0
    %70 = vmatpush2.msra.mxu0 0.0
    %71 = vmatprep.subr.mxu0 0.0
    %72 = vmatpush2.msra.mxu0 0.0
    %73 = vmatprep.subr.mxu0 0.0
    %74 = vmatpush2.msra.mxu0 0.0
    %75 = vmatprep.subr.mxu0 0.0
    %76 = vmatpush2.msra.mxu0 0.0
    %77 = vmatprep.subr.mxu0 0.0
    %78 = vmatpush2.msra.mxu0 0.0
    %79 = vmatprep.subr.mxu0 0.0
    %80 = vmatpush2.msra.mxu0 0.0
    %81 = vmatprep.subr.mxu0 0.0
    %82 = vmatpush2.msra.mxu0 0.0
    %83 = vmatprep.subr.mxu0 0.0
    %84 = vmatpush2.msra.mxu0 0.0
    %85 = vmatprep.subr.mxu0 0.0
    %86 = vmatpush2.msra.mxu0 0.0
    %87 = vmatprep.subr.mxu0 0.0
    %88 = vmatpush2.msra.mxu0 0.0
    %89 = vmatprep.subr.mxu0 0.0
    %90 = vmatpush2.msra.mxu0 0.0
    %91 = vmatprep.subr.mxu0 0.0
    %92 = vmatpush2.msra.mxu0 0.0
    %93 = vmatprep.subr.mxu0 0.0
    %94 = vmatpush2.msra.mxu0 0.0
    %95 = vmatprep.subr.mxu0 0.0
    %96 = vmatpush2.msra.mxu0 0.0
    %97 = vmatprep.subr.mxu0 0.0
    %98 = vmatpush2.msra.mxu0 0.0
    %99 = vmatprep.mubr.f32.mxu0 0.0
    %100 = vmatmul.mubr.f32.gmra.mxu0 %v30
    %v101 = vpop.f32.mrf.mxu0
    %v102 = vadd.f32 0.0, %v101
    %v103 = vpop.f32.mrf.mxu0
    %v104 = vadd.f32 0.0, %v103
    %105 = vmatprep.mubr.f32.mxu0 0.0
    %106 = vmatmul.mubr.f32.gmra.mxu0 %v33
    %v107 = vpop.f32.mrf.mxu0
    %v108 = vadd.f32 0.0, %v107
    %v109 = vpop.f32.mrf.mxu0
    %v110 = vadd.f32 0.0, %v109
    %111 = vdwg.mxu0
    %112 = vmatprep.subr.mxu0 0.0
    %113 = vmatpush1.msra.mxu0 0.0
    %114 = vmatprep.subr.mxu0 0.0
    %115 = vmatpush1.msra.mxu0 0.0
    %116 = vmatprep.subr.mxu0 0.0
    %117 = vmatpush1.msra.mxu0 0.0
    %118 = vmatprep.subr.mxu0 0.0
    %119 = vmatpush1.msra.mxu0 0.0
    %120 = vmatprep.subr.mxu0 0.0
    %121 = vmatpush1.msra.mxu0 0.0
    %122 = vmatprep.subr.mxu0 0.0
    %123 = vmatpush1.msra.mxu0 0.0
    %124 = vmatprep.subr.mxu0 0.0
    %125 = vmatpush1.msra.mxu0 0.0
    %126 = vmatprep.subr.mxu0 0.0
    %127 = vmatpush1.msra.mxu0 0.0
    %128 = vmatprep.subr.mxu0 0.0
    %129 = vmatpush1.msra.mxu0 0.0
    %130 = vmatprep.subr.mxu0 0.0
    %131 = vmatpush1.msra.mxu0 0.0
    %132 = vmatprep.subr.mxu0 0.0
    %133 = vmatpush1.msra.mxu0 0.0
    %134 = vmatprep.subr.mxu0 0.0
    %135 = vmatpush1.msra.mxu0 0.0
    %136 = vmatprep.subr.mxu0 0.0
    %137 = vmatpush1.msra.mxu0 0.0
    %138 = vmatprep.subr.mxu0 0.0
    %139 = vmatpush1.msra.mxu0 0.0
    %140 = vmatprep.subr.mxu0 0.0
    %141 = vmatpush1.msra.mxu0 0.0
    %142 = vmatprep.subr.mxu0 %v26
    %143 = vmatpush1.msra.mxu0 %v25
    %144 = vmatprep.subr.mxu0 0.0
    %145 = vmatpush2.msra.mxu0 0.0
    %146 = vmatprep.subr.mxu0 0.0
    %147 = vmatpush2.msra.mxu0 0.0
    %148 = vmatprep.subr.mxu0 0.0
    %149 = vmatpush2.msra.mxu0 0.0
    %150 = vmatprep.subr.mxu0 0.0
    %151 = vmatpush2.msra.mxu0 0.0
    %152 = vmatprep.subr.mxu0 0.0
    %153 = vmatpush2.msra.mxu0 0.0
    %154 = vmatprep.subr.mxu0 0.0
    %155 = vmatpush2.msra.mxu0 0.0
    %156 = vmatprep.subr.mxu0 0.0
    %157 = vmatpush2.msra.mxu0 0.0
    %158 = vmatprep.subr.mxu0 0.0
    %159 = vmatpush2.msra.mxu0 0.0
    %160 = vmatprep.subr.mxu0 0.0
    %161 = vmatpush2.msra.mxu0 0.0
    %162 = vmatprep.subr.mxu0 0.0
    %163 = vmatpush2.msra.mxu0 0.0
    %164 = vmatprep.subr.mxu0 0.0
    %165 = vmatpush2.msra.mxu0 0.0
    %166 = vmatprep.subr.mxu0 0.0
    %167 = vmatpush2.msra.mxu0 0.0
    %168 = vmatprep.subr.mxu0 0.0
    %169 = vmatpush2.msra.mxu0 0.0
    %170 = vmatprep.subr.mxu0 0.0
    %171 = vmatpush2.msra.mxu0 0.0
    %172 = vmatprep.subr.mxu0 0.0
    %173 = vmatpush2.msra.mxu0 0.0
    %174 = vmatprep.subr.mxu0 0.0
    %175 = vmatpush2.msra.mxu0 0.0
    %176 = vmatprep.mubr.f32.mxu0 0.0
    %177 = vmatmul.mubr.f32.gmra.mxu0 %v30
    %v178 = vpop.f32.mrf.mxu0
    %v179 = vadd.f32 0.0, %v178
    %v180 = vpop.f32.mrf.mxu0
    %v181 = vadd.f32 0.0, %v180
    %182 = vmatprep.mubr.f32.mxu0 0.0
    %183 = vmatmul.mubr.f32.gmra.mxu0 %v33
    %v184 = vpop.f32.mrf.mxu0
    %v185 = vadd.f32 0.0, %v184
    %v186 = vpop.f32.mrf.mxu0
    %v187 = vadd.f32 0.0, %v186
    %188 = vdwg.mxu0
    %189 = vmatprep.subr.mxu0 0.0
    %190 = vmatpush1.msra.mxu0 0.0
    %191 = vmatprep.subr.mxu0 0.0
    %192 = vmatpush1.msra.mxu0 0.0
    %193 = vmatprep.subr.mxu0 0.0
    %194 = vmatpush1.msra.mxu0 0.0
    %195 = vmatprep.subr.mxu0 0.0
    %196 = vmatpush1.msra.mxu0 0.0
    %197 = vmatprep.subr.mxu0 0.0
    %198 = vmatpush1.msra.mxu0 0.0
    %199 = vmatprep.subr.mxu0 0.0
    %200 = vmatpush1.msra.mxu0 0.0
    %201 = vmatprep.subr.mxu0 0.0
    %202 = vmatpush1.msra.mxu0 0.0
    %203 = vmatprep.subr.mxu0 0.0
    %204 = vmatpush1.msra.mxu0 0.0
    %205 = vmatprep.subr.mxu0 0.0
    %206 = vmatpush1.msra.mxu0 0.0
    %207 = vmatprep.subr.mxu0 0.0
    %208 = vmatpush1.msra.mxu0 0.0
    %209 = vmatprep.subr.mxu0 0.0
    %210 = vmatpush1.msra.mxu0 0.0
    %211 = vmatprep.subr.mxu0 0.0
    %212 = vmatpush1.msra.mxu0 0.0
    %213 = vmatprep.subr.mxu0 0.0
    %214 = vmatpush1.msra.mxu0 0.0
    %215 = vmatprep.subr.mxu0 0.0
    %216 = vmatpush1.msra.mxu0 0.0
    %217 = vmatprep.subr.mxu0 0.0
    %218 = vmatpush1.msra.mxu0 0.0
    %219 = vmatprep.subr.mxu0 0.0
    %220 = vmatpush1.msra.mxu0 %v27
    %221 = vmatprep.subr.mxu0 0.0
    %222 = vmatpush2.msra.mxu0 0.0
    %223 = vmatprep.subr.mxu0 0.0
    %224 = vmatpush2.msra.mxu0 0.0
    %225 = vmatprep.subr.mxu0 0.0
    %226 = vmatpush2.msra.mxu0 0.0
    %227 = vmatprep.subr.mxu0 0.0
    %228 = vmatpush2.msra.mxu0 0.0
    %229 = vmatprep.subr.mxu0 0.0
    %230 = vmatpush2.msra.mxu0 0.0
    %231 = vmatprep.subr.mxu0 0.0
    %232 = vmatpush2.msra.mxu0 0.0
    %233 = vmatprep.subr.mxu0 0.0
    %234 = vmatpush2.msra.mxu0 0.0
    %235 = vmatprep.subr.mxu0 0.0
    %236 = vmatpush2.msra.mxu0 0.0
    %237 = vmatprep.subr.mxu0 0.0
    %238 = vmatpush2.msra.mxu0 0.0
    %239 = vmatprep.subr.mxu0 0.0
    %240 = vmatpush2.msra.mxu0 0.0
    %241 = vmatprep.subr.mxu0 0.0
    %242 = vmatpush2.msra.mxu0 0.0
    %243 = vmatprep.subr.mxu0 0.0
    %244 = vmatpush2.msra.mxu0 0.0
    %245 = vmatprep.subr.mxu0 0.0
    %246 = vmatpush2.msra.mxu0 0.0
    %247 = vmatprep.subr.mxu0 0.0
    %248 = vmatpush2.msra.mxu0 0.0
    %249 = vmatprep.subr.mxu0 0.0
    %250 = vmatpush2.msra.mxu0 0.0
    %251 = vmatprep.subr.mxu0 0.0
    %252 = vmatpush2.msra.mxu0 0.0
    %253 = vmatprep.mubr.f32.mxu0 0.0
    %254 = vmatmul.mubr.f32.gmra.mxu0 %v30
    %v255 = vpop.f32.mrf.mxu0
    %v256 = vadd.f32 0.0, %v255
    %v257 = vpop.f32.mrf.mxu0
    %258 = vmatprep.mubr.f32.mxu0 0.0
    %259 = vmatmul.mubr.f32.gmra.mxu0 %v33
    %v260 = vpop.f32.mrf.mxu0
    %v261 = vadd.f32 0.0, %v260
    %v262 = vpop.f32.mrf.mxu0
    %263 = vdwg.mxu0
    %v264 = vadd.f32 %v102, %v104
    %v265 = vadd.f32 %v264, %v179
    %v266 = vadd.f32 %v265, %v181
    %vm267 = vcmask 924672
    %v268 = vsel %vm267, %v256, 0.0
    %v269 = vadd.f32 %v266, %v268
    %270 = vadd.xlane.f32.xlu0 %v269
    %v271 = vpop.xlane.xlu0 %270
    %v272 = vadd.f32 %v108, %v110
    %v273 = vadd.f32 %v272, %v185
    %v274 = vadd.f32 %v273, %v187
    %v275 = vsel %vm267, %v261, 0.0
    %v276 = vadd.f32 %v274, %v275
    %277 = vadd.xlane.f32.xlu0 %v276
    %v278 = vpop.xlane.xlu0 %277
    %v279 = vadd.f32 %v271, 0.0
    %v280 = vadd.f32 %v278, 0.0
    %v281 = vmul.f32 %v102, %v102
    %v282 = vmul.f32 %v104, %v104
    %v283 = vmul.f32 %v179, %v179
    %v284 = vmul.f32 %v181, %v181
    %v285 = vmul.f32 %v256, %v256
    %v286 = vmul.f32 %v108, %v108
    %v287 = vmul.f32 %v110, %v110
    %v288 = vmul.f32 %v185, %v185
    %v289 = vmul.f32 %v187, %v187
    %v290 = vmul.f32 %v261, %v261
    %v291 = vadd.f32 %v281, %v282
    %v292 = vadd.f32 %v291, %v283
    %v293 = vadd.f32 %v292, %v284
    %v294 = vsel %vm267, %v285, 0.0
    %v295 = vadd.f32 %v293, %v294
    %296 = vadd.xlane.f32.xlu0 %v295
    %v297 = vpop.xlane.xlu0 %296
    %v298 = vadd.f32 %v286, %v287
    %v299 = vadd.f32 %v298, %v288
    %v300 = vadd.f32 %v299, %v289
    %v301 = vsel %vm267, %v290, 0.0
    %v302 = vadd.f32 %v300, %v301
    %303 = vadd.xlane.f32.xlu0 %v302
    %v304 = vpop.xlane.xlu0 %303
    %v305 = vadd.f32 %v297, 0.0
    %v306 = vadd.f32 %v304, 0.0
    %v307 = vmul.f32 %v279, 0.0016
    %v308 = vmul.f32 %v280, 0.0016
    %v309 = vmul.f32 %v305, 0.0016
    %v310 = vmul.f32 %v306, 0.0016
    %v311 = vmul.f32 %v307, %v307
    %v312 = vmul.f32 %v308, %v308
    %v313 = vsub.f32 %v309, %v311
    %v314 = vsub.f32 %v310, %v312
    %v315 = vmax.f32 %v313, 0.0
    %v316 = vmax.f32 %v314, 0.0
    %v317 = vld [vmem:[%s2] sm:$0xff]
    %v318 = vld [vmem:[%s2 + $0x8] sm:$0xff]
    %v319 = vadd.f32 %v315, 1e-05
    %v320 = vadd.f32 %v316, 1e-05
    %v321 = vrsqrt.pop %v319
    %v322 = vrsqrt.pop %v320
    %v323 = vmul.f32 %v317, %v321
    %v324 = vmul.f32 %v318, %v322
    %v325 = vld [vmem:[%s3] sm:$0xff]
    %v326 = vld [vmem:[%s3 + $0x8] sm:$0xff]
    %v327 = vmul.f32 %v307, %v323
    %v328 = vmul.f32 %v308, %v324
    %v329 = vsub.f32 %v325, %v327
    %v330 = vsub.f32 %v326, %v328
    %332 = vset.pattern.permute.xlu0 0
    %333 = vperm.xlu0 %332, %v323
    %v334 = vpop.permute.xlu0 %333
    %337 = vset.pattern.permute.xlu0 0
    %338 = vperm.xlu0 %337, %v324
    %v339 = vpop.permute.xlu0 %338
    %v341 = vmul.f32 %v102, %v334
    %v342 = vmul.f32 %v104, %v334
    %v343 = vmul.f32 %v179, %v334
    %v344 = vmul.f32 %v181, %v334
    %v345 = vmul.f32 %v256, %v334
    %v346 = vmul.f32 %v108, %v339
    %v347 = vmul.f32 %v110, %v339
    %v348 = vmul.f32 %v185, %v339
    %v349 = vmul.f32 %v187, %v339
    %v350 = vmul.f32 %v261, %v339
    %352 = vset.pattern.permute.xlu0 0
    %353 = vperm.xlu0 %352, %v329
    %v354 = vpop.permute.xlu0 %353
    %357 = vset.pattern.permute.xlu0 0
    %358 = vperm.xlu0 %357, %v330
    %v359 = vpop.permute.xlu0 %358
    %v361 = vadd.f32 %v341, %v354
    %v362 = vadd.f32 %v342, %v354
    %v363 = vadd.f32 %v343, %v354
    %v364 = vadd.f32 %v344, %v354
    %v365 = vadd.f32 %v345, %v354
    %v366 = vadd.f32 %v346, %v359
    %v367 = vadd.f32 %v347, %v359
    %v368 = vadd.f32 %v348, %v359
    %v369 = vadd.f32 %v349, %v359
    %v370 = vadd.f32 %v350, %v359
    %v371 = vxor.u32 %v361, 2147483648
    %v372 = vxor.u32 %v362, 2147483648
    %v373 = vxor.u32 %v363, 2147483648
    %v374 = vxor.u32 %v364, 2147483648
    %v375 = vxor.u32 %v365, 2147483648
    %v376 = vxor.u32 %v366, 2147483648
    %v377 = vxor.u32 %v367, 2147483648
    %v378 = vxor.u32 %v368, 2147483648
    %v379 = vxor.u32 %v369, 2147483648
    %v380 = vxor.u32 %v370, 2147483648
    %v381 = vmul.f32 %v371, 1.442695
    %v382 = vpow.pop %v381
    %v383 = vmul.f32 %v372, 1.442695
    %v384 = vpow.pop %v383
    %v385 = vmul.f32 %v373, 1.442695
    %v386 = vpow.pop %v385
    %v387 = vmul.f32 %v374, 1.442695
    %v388 = vpow.pop %v387
    %v389 = vmul.f32 %v375, 1.442695
    %v390 = vpow.pop %v389
    %v391 = vmul.f32 %v376, 1.442695
    %v392 = vpow.pop %v391
    %v393 = vmul.f32 %v377, 1.442695
    %v394 = vpow.pop %v393
    %v395 = vmul.f32 %v378, 1.442695
    %v396 = vpow.pop %v395
    %v397 = vmul.f32 %v379, 1.442695
    %v398 = vpow.pop %v397
    %v399 = vmul.f32 %v380, 1.442695
    %v400 = vpow.pop %v399
    %v401 = vadd.f32 %v382, 1.0
    %v402 = vadd.f32 %v384, 1.0
    %v403 = vadd.f32 %v386, 1.0
    %v404 = vadd.f32 %v388, 1.0
    %v405 = vadd.f32 %v390, 1.0
    %v406 = vadd.f32 %v392, 1.0
    %v407 = vadd.f32 %v394, 1.0
    %v408 = vadd.f32 %v396, 1.0
    %v409 = vadd.f32 %v398, 1.0
    %v410 = vadd.f32 %v400, 1.0
    %v411 = vrcp.pop %v401
    %v412 = vmul.f32 1.0, %v411
    %v413 = vrcp.pop %v402
    %v414 = vmul.f32 1.0, %v413
    %v415 = vrcp.pop %v403
    %v416 = vmul.f32 1.0, %v415
    %v417 = vrcp.pop %v404
    %v418 = vmul.f32 1.0, %v417
    %v419 = vrcp.pop %v405
    %v420 = vmul.f32 1.0, %v419
    %v421 = vrcp.pop %v406
    %v422 = vmul.f32 1.0, %v421
    %v423 = vrcp.pop %v407
    %v424 = vmul.f32 1.0, %v423
    %v425 = vrcp.pop %v408
    %v426 = vmul.f32 1.0, %v425
    %v427 = vrcp.pop %v409
    %v428 = vmul.f32 1.0, %v427
    %v429 = vrcp.pop %v410
    %v430 = vmul.f32 1.0, %v429
    %v431 = vmul.f32 %v361, %v412
    %v432 = vmul.f32 %v362, %v414
    %v433 = vmul.f32 %v363, %v416
    %v434 = vmul.f32 %v364, %v418
    %v435 = vmul.f32 %v365, %v420
    %v436 = vmul.f32 %v366, %v422
    %v437 = vmul.f32 %v367, %v424
    %v438 = vmul.f32 %v368, %v426
    %v439 = vmul.f32 %v369, %v428
    %v440 = vmul.f32 %v370, %v430
    %v441 = vpack.c.bf16 %v431, %v431
    %v442 = vpack.c.bf16 %v432, %v432
    %v443 = vpack.c.bf16 %v433, %v433
    %v444 = vpack.c.bf16 %v434, %v434
    %v445 = vpack.c.bf16 %v435, %v435
    %v451 = vunpack.c.l.b16 %v441
    %v452 = vunpack.c.l.b16 %v442
    %v453 = vunpack.c.l.b16 %v443
    %v454 = vunpack.c.l.b16 %v444
    %v455 = vunpack.c.l.b16 %v445
    %v456 = vpack.c.b16 %v452, %v451
    %v457 = vpack.c.b16 %v454, %v453
    %v458 = vpack.c.b16 %v455, %v455
    %462 = vst [vmem:[#allocation2] sm:$0xff] %v456
    %463 = vst [vmem:[#allocation2 + $0x8] sm:$0xff] %v457
    %vm464 = vcmask 920576
    %465 = vst.msk [vmem:[#allocation2 + $0x10] sm:$0xf] %vm464, %v458
    %v466 = vpack.c.bf16 %v436, %v436
    %v467 = vpack.c.bf16 %v437, %v437
    %v468 = vpack.c.bf16 %v438, %v438
    %v469 = vpack.c.bf16 %v439, %v439
    %v470 = vpack.c.bf16 %v440, %v440
    %v476 = vunpack.c.l.b16 %v466
    %v477 = vunpack.c.l.b16 %v467
    %v478 = vunpack.c.l.b16 %v468
    %v479 = vunpack.c.l.b16 %v469
    %v480 = vunpack.c.l.b16 %v470
    %v481 = vpack.c.b16 %v477, %v476
    %v482 = vpack.c.b16 %v479, %v478
    %v483 = vpack.c.b16 %v480, %v480
    %487 = vst [vmem:[#allocation4] sm:$0xff] %v481
    %488 = vst [vmem:[#allocation4 + $0x8] sm:$0xff] %v482
    %489 = vst.msk [vmem:[#allocation4 + $0x10] sm:$0xf] %vm464, %v483
    // Predicated region
    $region18: #{tpu_custom_call.1} parent=1 // pred_check
      _
    $region19: #{tpu_custom_call.1} parent=1 // pred_check_branch
      %491 = sbr.rel (0) target = $region21
    $region20: #{tpu_custom_call.1} parent=1 // pred_region
      %s493 = ssub.s32 320, 320
      %494 = vsyncadd [#allocation3], %s493
      %s496 = sshll.u32 [#allocation2], 4
      %s497 = int_to_ptr.vmem [resolvable:$true] %s496
      %499 = dma.vmem_to_hbm [thread:$0]  %s497, 320, %s4, [#allocation3]
    $region21: #{tpu_custom_call.1} parent=1 // pred_fallthru
      _
    // Predicated region
    $region22: #{tpu_custom_call.1} parent=1 // pred_check
      _
    $region23: #{tpu_custom_call.1} parent=1 // pred_check_branch
      %501 = sbr.rel (0) target = $region25
    $region24: #{tpu_custom_call.1} parent=1 // pred_region
      %s503 = ssub.s32 320, 320
      %504 = vsyncadd [#allocation5], %s503
      %s506 = sshll.u32 [#allocation4], 4
      %s507 = int_to_ptr.vmem [resolvable:$true] %s506
      %509 = dma.vmem_to_hbm [thread:$0]  %s507, 320, %s5, [#allocation5]
    $region25: #{tpu_custom_call.1} parent=1 // pred_fallthru
      _
    // Predicated region
    $region26: #{tpu_custom_call.1} parent=1 // pred_check
      _
    $region27: #{tpu_custom_call.1} parent=1 // pred_check_branch
      %511 = sbr.rel (0) target = $region29
    $region28: #{tpu_custom_call.1} parent=1 // pred_region
      %512 = dma.done [#allocation3], 320
    $region29: #{tpu_custom_call.1} parent=1 // pred_fallthru
      _
    // Predicated region
    $region30: #{tpu_custom_call.1} parent=1 // pred_check
      _
    $region31: #{tpu_custom_call.1} parent=1 // pred_check_branch
      %514 = sbr.rel (0) target = $region33
    $region32: #{tpu_custom_call.1} parent=1 // pred_region
      %515 = dma.done [#allocation5], 320
    $region33: #{tpu_custom_call.1} parent=1 // pred_fallthru
      _
    %516 = vsyncpa [#allocation3], 1
    %517 = vsyncpa [#allocation5], 1

</llo_original>
